<compile_context>
chip_gen: v6e
topology: v6e:2x2x1
jax: 0.10.0
libtpu: 0.0.40
codegen_flags: <defaults>
</compile_context>

<pallas_src>
import functools

import jax
import jax.numpy as jnp
from jax import lax
from jax.experimental import pallas as pl
from jax.experimental.pallas import tpu as pltpu

_LANE = 128
_SUBLANE = 8


def _round_up(a: int, m: int) -> int:
    return ((a + m - 1) // m) * m


def _vmem_budgets():
    """(per-input block budget bytes, vmem_limit_bytes), generation-aware."""
    cap = None
    try:
        cap = int(pltpu.get_tpu_info().vmem_capacity_bytes)
    except Exception:
        kind = ""
        try:
            kind = jax.devices()[0].device_kind.lower()
        except Exception:
            pass
        cap = (128 << 20) if ("v5" in kind or "v6" in kind) else (64 << 20)
    if cap >= (100 << 20):          # v5e / v6e: 128 MiB physical VMEM
        return (4 << 20), (64 << 20)
    return (2 << 20), (40 << 20)    # v7x (64 MiB) or unknown: stay conservative


def _mse_partial_kernel(x_ref, t_ref, acc_ref, *, tr, tc, rows, cols,
                        row_splits, red_blocks, need_row_mask, need_col_mask,
                        ngroups, unroll):
    p = pl.program_id(0)   # parallel axis: column blocks (or row halves)
    r = pl.program_id(1)   # reduction axis: row blocks within this partial

    if row_splits == 1:
        cb = p             # column-block index
        rb = r             # logical row-block index
    else:                  # single column block, rows split across cores
        cb = 0
        rb = p * red_blocks + r

    # First reduction step for this resident partial-output block: zero it.
    @pl.when(r == 0)
    def _():
        acc_ref[...] = jnp.zeros_like(acc_ref)

    def tile_sum(row_mask, col_mask):
        """Fold this (tr, tc) tile into an (8, tc) f32 partial, streaming
        8-row groups directly from the refs (no full-tile temporaries)."""
        col_valid = None
        if col_mask:
            col_valid = (cb * tc + lax.broadcasted_iota(
                jnp.int32, (_SUBLANE, tc), 1)) < cols

        def group(off, acc):
            d = (x_ref[pl.ds(off, _SUBLANE), :].astype(jnp.float32)
                 - t_ref[pl.ds(off, _SUBLANE), :].astype(jnp.float32))
            sq = d * d
            valid = col_valid
            if row_mask:
                rid = rb * tr + off + lax.broadcasted_iota(
                    jnp.int32, (_SUBLANE, tc), 0)
                rv = rid < rows
                valid = rv if valid is None else jnp.logical_and(valid, rv)
            if valid is not None:
                # Keeps undefined padding (even NaN) of partial blocks out.
                sq = jnp.where(valid, sq, 0.0)
            return acc + sq

        init = jnp.zeros((_SUBLANE, tc), jnp.float32)
        if ngroups <= 8:
            acc = init
            for g in range(ngroups):
                acc = group(g * _SUBLANE, acc)
            return acc
        return lax.fori_loop(
            0, ngroups,
            lambda g, a: group(pl.multiple_of(g * _SUBLANE, _SUBLANE), a),
            init, unroll=unroll)

    if not need_row_mask and not need_col_mask:
        acc_ref[0] += tile_sum(False, False)
    else:
        # Masking is paid only on boundary tiles; interior tiles stay at
        # sub/mul/add per element.
        edge = None
        if need_row_mask:
            edge = (rb + 1) * tr > rows
        if need_col_mask:
            ce = (cb + 1) * tc > cols
            edge = ce if edge is None else jnp.logical_or(edge, ce)

        @pl.when(edge)
        def _():
            acc_ref[0] += tile_sum(need_row_mask, need_col_mask)

        @pl.when(jnp.logical_not(edge))
        def _():
            acc_ref[0] += tile_sum(False, False)


def content_loss_forward(x: jax.Array, target: jax.Array,
                         *, tc_max: int = 1024, tr_max: int = 2048):
    """Returns (output, loss): output == x (identity pass-through) and
    loss == mean((x - target)**2) computed with a Pallas TPU kernel."""
    assert x.shape == target.shape, "ContentLoss requires input.shape == target.shape"

    n = x.size
    if x.ndim >= 2:
        cols = int(x.shape[-2]) * int(x.shape[-1])     # spatial -> lanes
    elif x.ndim == 1:
        cols = int(x.shape[-1])
    else:
        cols = 1
    rows = n // cols
    itemsize = jnp.dtype(x.dtype).itemsize

    # Free contiguous reshape (no HBM copy): NCHW -> (B*C, H*W).
    x2 = x.reshape(rows, cols)
    t2 = target.reshape(rows, cols)

    block_budget, vmem_limit = _vmem_budgets()

    # Lane-dense column tile (multiple of 128, capped for vreg pressure);
    # row tile is a multiple of 8 sized to the per-input byte budget.
    tc = min(_round_up(cols, _LANE), tc_max)
    tr_cap = max(_SUBLANE,
                 (min(block_budget // (tc * itemsize), tr_max)
                  // _SUBLANE) * _SUBLANE)
    tr = min(_round_up(rows, _SUBLANE), tr_cap)

    col_blocks = pl.cdiv(cols, tc)
    row_blocks = pl.cdiv(rows, tr)

    # Parallel axis: column blocks; if there is only one, split the row
    # blocks in two so both v7x TensorCores always have work.
    row_splits = 2 if (col_blocks == 1 and row_blocks >= 2) else 1
    red_blocks = pl.cdiv(row_blocks, row_splits)
    num_par = col_blocks * row_splits

    need_row_mask = (row_splits * red_blocks * tr != rows)
    need_col_mask = (col_blocks * tc != cols)
    ngroups = tr // _SUBLANE

    if row_splits == 1:
        in_map = lambda p, r: (r, p)
    elif row_splits * red_blocks == row_blocks:          # even split
        in_map = lambda p, r: (p * red_blocks + r, 0)
    else:                                                # odd split: clamp phantom
        last_rb = row_blocks - 1
        in_map = lambda p, r: (jnp.minimum(p * red_blocks + r, last_rb), 0)

    in_spec = pl.BlockSpec((tr, tc), in_map)
    out_spec = pl.BlockSpec((1, _SUBLANE, tc), lambda p, r: (p, 0, 0))

    kernel = functools.partial(
        _mse_partial_kernel, tr=tr, tc=tc, rows=rows, cols=cols,
        row_splits=row_splits, red_blocks=red_blocks,
        need_row_mask=need_row_mask, need_col_mask=need_col_mask,
        ngroups=ngroups, unroll=4)

    partials = pl.pallas_call(
        kernel,
        out_shape=jax.ShapeDtypeStruct((num_par, _SUBLANE, tc), jnp.float32),
        grid_spec=pl.GridSpec(
            grid=(num_par, red_blocks),
            in_specs=[in_spec, in_spec],
            out_specs=out_spec,
        ),
        compiler_params=pltpu.CompilerParams(
            dimension_semantics=("parallel", "arbitrary"),
            vmem_limit_bytes=vmem_limit,
        ),
    )(x2, t2)

    # Tiny finishing reduce + mean scale in plain JAX (one-time XLU work).
    loss = jnp.sum(partials) * jnp.float32(1.0 / n)

    # Forward returns the input unchanged (transparent layer).
    return x, loss


if __name__ == "__main__":
    key = jax.random.PRNGKey(0)
    kx, kt = jax.random.split(key)

    # Small NCHW activation, matching the module's conv-feature-map inputs.
    x = jax.random.normal(kx, (2, 4, 16, 16), dtype=jnp.float32)
    target = jax.random.normal(kt, (2, 4, 16, 16), dtype=jnp.float32)

    out, loss = content_loss_forward(x, target)
    out = jax.block_until_ready(out)
    loss = jax.block_until_ready(loss)

    ref = jnp.mean((x - target) ** 2)
    assert jnp.allclose(loss, ref, rtol=1e-5, atol=1e-6), (loss, ref)
    assert jnp.array_equal(out, x)

    # Multiple column blocks -> parallel (megacore-shardable) axis.
    k1, k2 = jax.random.split(kt)
    xb = jax.random.normal(k1, (1, 16, 128, 128), dtype=jnp.float32)
    tb = jax.random.normal(k2, (1, 16, 128, 128), dtype=jnp.float32)
    _, loss_b = content_loss_forward(xb, tb)
    assert jnp.allclose(jax.block_until_ready(loss_b),
                        jnp.mean((xb - tb) ** 2), rtol=1e-4, atol=1e-6)

    # Ragged extents: boundary-only row/col masking.
    k3, k4 = jax.random.split(k1)
    xr = jax.random.normal(k3, (2, 5, 50, 70), dtype=jnp.float32)
    tr_ = jax.random.normal(k4, (2, 5, 50, 70), dtype=jnp.float32)
    _, loss_r = content_loss_forward(xr, tr_)
    assert jnp.allclose(jax.block_until_ready(loss_r),
                        jnp.mean((xr - tr_) ** 2), rtol=1e-4, atol=1e-6)

    # bf16 activations: kernel upcasts in-vreg, halving HBM traffic.
    xh = x.astype(jnp.bfloat16)
    th = target.astype(jnp.bfloat16)
    _, loss_h = content_loss_forward(xh, th)
    ref_h = jnp.mean((xh.astype(jnp.float32) - th.astype(jnp.float32)) ** 2)
    assert jnp.allclose(jax.block_until_ready(loss_h), ref_h,
                        rtol=1e-4, atol=1e-6), (loss_h, ref_h)

    # Tall-skinny case: one column block -> row-split parallel axis, long
    # fori_loop group fold, ragged rows (odd row-block split exercises the
    # clamped phantom block).
    k5, k6 = jax.random.split(k3)
    xs = jax.random.normal(k5, (25, 200, 16, 16), dtype=jnp.float32)
    ts = jax.random.normal(k6, (25, 200, 16, 16), dtype=jnp.float32)
    _, loss_s = content_loss_forward(xs, ts)
    assert jnp.allclose(jax.block_until_ready(loss_s),
                        jnp.mean((xs - ts) ** 2), rtol=1e-4, atol=1e-6)

    print("KERNEL_OK")
</pallas_src>

<mosaic_0001>
module attributes {stable_mosaic.version = 11 : i64} {
  func.func @_mse_partial_kernel(%arg0: i32, %arg1: i32, %arg2: memref<8x256xf32, #tpu.memory_space<vmem>>, %arg3: memref<8x256xf32, #tpu.memory_space<vmem>>, %arg4: memref<1x8x256xf32, #tpu.memory_space<vmem>>) attributes {dimension_semantics = [#tpu.dimension_semantics<parallel>, #tpu.dimension_semantics<arbitrary>], iteration_bounds = array<i64: 1, 1>, scalar_prefetch = 0 : i64, scratch_operands = 0 : i64, tpu.core_type = #tpu.core_type<tc>, window_params = [{transform_indices = @transform_0, window_bounds = array<i64: 8, 256>}, {transform_indices = @transform_1, window_bounds = array<i64: 8, 256>}, {transform_indices = @transform_2, window_bounds = array<i64: 1, 8, 256>}]} {
    %c0_i32 = arith.constant 0 : i32
    %0 = arith.cmpi eq, %arg1, %c0_i32 : i32
    %1 = arith.extui %0 : i1 to i32
    %c0_i32_0 = arith.constant 0 : i32
    %2 = arith.cmpi ne, %1, %c0_i32_0 : i32
    scf.if %2 {
      %cst_10 = arith.constant 0.000000e+00 : f32
      %15 = vector.broadcast %cst_10 : f32 to vector<1x8x256xf32>
      %c0_11 = arith.constant 0 : index
      %c0_12 = arith.constant 0 : index
      %c0_13 = arith.constant 0 : index
      %16 = vector.load %arg4[%c0_11, %c0_12, %c0_13] : memref<1x8x256xf32, #tpu.memory_space<vmem>>, vector<1x8x256xf32>
      tpu.vector_store %arg4[%c0_11, %c0_12, %c0_13], %15 {strides = array<i32>} : memref<1x8x256xf32, #tpu.memory_space<vmem>>, vector<1x8x256xf32>,
    } else {
    }
    %c0 = arith.constant 0 : index
    %c0_1 = arith.constant 0 : index
    %c0_2 = arith.constant 0 : index
    %3 = vector.load %arg4[%c0, %c0_1, %c0_2] : memref<1x8x256xf32, #tpu.memory_space<vmem>>, vector<1x8x256xf32>
    %4 = vector.shape_cast %3 : vector<1x8x256xf32> to vector<8x256xf32>
    %cst = arith.constant 0.000000e+00 : f32
    %5 = vector.broadcast %cst : f32 to vector<8x256xf32>
    %c0_3 = arith.constant 0 : index
    %c0_4 = arith.constant 0 : index
    %6 = vector.load %arg2[%c0_3, %c0_4] : memref<8x256xf32, #tpu.memory_space<vmem>>, vector<8x256xf32>
    %c0_5 = arith.constant 0 : index
    %c0_6 = arith.constant 0 : index
    %7 = vector.load %arg3[%c0_5, %c0_6] : memref<8x256xf32, #tpu.memory_space<vmem>>, vector<8x256xf32>
    %8 = arith.subf %6, %7 : vector<8x256xf32>
    %9 = arith.mulf %8, %8 : vector<8x256xf32>
    %10 = arith.addf %5, %9 : vector<8x256xf32>
    %11 = arith.addf %4, %10 : vector<8x256xf32>
    %c0_7 = arith.constant 0 : index
    %c0_8 = arith.constant 0 : index
    %c0_9 = arith.constant 0 : index
    %12 = vector.load %arg4[%c0_7, %c0_8, %c0_9] : memref<1x8x256xf32, #tpu.memory_space<vmem>>, vector<1x8x256xf32>
    %13 = vector.shape_cast %12 : vector<1x8x256xf32> to vector<8x256xf32>
    %14 = vector.shape_cast %11 : vector<8x256xf32> to vector<1x8x256xf32>
    tpu.vector_store %arg4[%c0_7, %c0_8, %c0_9], %14 {strides = array<i32>} : memref<1x8x256xf32, #tpu.memory_space<vmem>>, vector<1x8x256xf32>,
    return
  }
  func.func @transform_0(%arg0: i32, %arg1: i32) -> (i32, i32) {
    %c0_i32 = arith.constant 0 : i32
    return %arg1, %arg0 : i32, i32
  }
  func.func @transform_1(%arg0: i32, %arg1: i32) -> (i32, i32) {
    %c0_i32 = arith.constant 0 : i32
    return %arg1, %arg0 : i32, i32
  }
  func.func @transform_2(%arg0: i32, %arg1: i32) -> (i32, i32, i32) {
    %c0_i32 = arith.constant 0 : i32
    %c0_i32_0 = arith.constant 0 : i32
    %c0_i32_1 = arith.constant 0 : i32
    return %arg0, %c0_i32, %c0_i32_0 : i32, i32, i32
  }
}

</mosaic_0001>

<llo_original>
// kernel: tpu_custom_call.1
$region0: #{tpu_custom_call.1}
  #allocation0 [shape = 'u32[]', space=smem, size = 0x4, offset = 0x4, fixed_abs, tag = 'smem constant byte address 0x4 - core index']
  #allocation1 [shape = 'u32[144,128]{1,0:T(1,128)}', space=vmem, size = 0x12000, scoped, tag = 'internal scratch']
  %s0 = inlined_call_operand.hbm [shape: f32[8,256], index: 0, kind: input, shape index: {}]
  %s1 = inlined_call_operand.hbm [shape: f32[8,256], index: 1, kind: input, shape index: {}]
  %s2 = inlined_call_operand.hbm [shape: f32[1,8,256], index: 2, kind: output, shape index: {}]
  %s3 = sld [smem:[#allocation0]]
  $region30: #{tpu_custom_call.1} parent=0
    _
  %s5 = ssub.s32 1, %s3
  %s6 = scalar_select 0, %s5, %s3
  $region1: #{tpu_custom_call.1} parent=0
    #allocation2 [shape = 'u8[8192]{0}', space=vmem, size = 0x2000, scoped, tag = 'input window, operand 0, single buffered']
    #allocation3 [shape = 's32[1]{0}', space=sflag, size = 0x4, scoped, tag = 'scoped memory for tpu_custom_call.1']
    #allocation4 [shape = 's32[1]{0}', space=sflag, size = 0x4, scoped, tag = 'scoped memory for tpu_custom_call.1']
    #allocation5 [shape = 'u8[8192]{0}', space=vmem, size = 0x2000, scoped, tag = 'input window, operand 1, single buffered']
    #allocation6 [shape = 's32[1]{0}', space=sflag, size = 0x4, scoped, tag = 'scoped memory for tpu_custom_call.1']
    #allocation7 [shape = 'u8[8192]{0}', space=vmem, size = 0x2000, scoped, tag = 'output window, operand 0, single buffered']
    %7 = vsyncpa [#allocation3], 0
    %8 = vsyncpa [#allocation6], 0
    %9 = vsyncpa [#allocation4], 0
    // Predicated region
    $region2: #{tpu_custom_call.1} parent=1 // pred_check
      _
    $region3: #{tpu_custom_call.1} parent=1 // pred_check_branch
      %11 = sbr.rel (0) target = $region5
    $region4: #{tpu_custom_call.1} parent=1 // pred_region
      %s13 = ssub.s32 256, 256
      %14 = vsyncadd [#allocation3], %s13
      %s16 = sshll.u32 [#allocation2], 4
      %s17 = int_to_ptr.vmem [resolvable:$true] %s16
      %19 = dma.hbm_to_vmem [thread:$0]  %s0, 256, %s17, [#allocation3]
    $region5: #{tpu_custom_call.1} parent=1 // pred_fallthru
      _
    // Predicated region
    $region6: #{tpu_custom_call.1} parent=1 // pred_check
      _
    $region7: #{tpu_custom_call.1} parent=1 // pred_check_branch
      %21 = sbr.rel (0) target = $region9
    $region8: #{tpu_custom_call.1} parent=1 // pred_region
      %s23 = ssub.s32 256, 256
      %24 = vsyncadd [#allocation6], %s23
      %s26 = sshll.u32 [#allocation5], 4
      %s27 = int_to_ptr.vmem [resolvable:$true] %s26
      %29 = dma.hbm_to_vmem [thread:$0]  %s1, 256, %s27, [#allocation6]
    $region9: #{tpu_custom_call.1} parent=1 // pred_fallthru
      _
    // Predicated region
    $region10: #{tpu_custom_call.1} parent=1 // pred_check
      _
    $region11: #{tpu_custom_call.1} parent=1 // pred_check_branch
      %31 = sbr.rel (0) target = $region13
    $region12: #{tpu_custom_call.1} parent=1 // pred_region
      %32 = dma.done [#allocation3], 256
    $region13: #{tpu_custom_call.1} parent=1 // pred_fallthru
      _
    // Predicated region
    $region14: #{tpu_custom_call.1} parent=1 // pred_check
      _
    $region15: #{tpu_custom_call.1} parent=1 // pred_check_branch
      %34 = sbr.rel (0) target = $region17
    $region16: #{tpu_custom_call.1} parent=1 // pred_region
      %35 = dma.done [#allocation6], 256
    $region17: #{tpu_custom_call.1} parent=1 // pred_fallthru
      _
    %p36 = scmp.eq.s32.totalorder 0, 0
    // Predicated region
    $region18: #{tpu_custom_call.1} parent=1 // pred_check
      %p37 = pneg %p36
    $region19: #{tpu_custom_call.1} parent=1 // pred_check_branch
      %39 = sbr.rel (%p37) target = $region21
    $region20: #{tpu_custom_call.1} parent=1 // pred_region
      %40 = vst [vmem:[#allocation7] sm:$0xff] 0.0
      %41 = vst [vmem:[#allocation7 + $0x8] sm:$0xff] 0.0
    $region21: #{tpu_custom_call.1} parent=1 // pred_fallthru
      _
    %v42 = vld [vmem:[#allocation7] sm:$0xff]
    %v43 = vld [vmem:[#allocation7 + $0x8] sm:$0xff]
    %v44 = vld [vmem:[#allocation2] sm:$0xff]
    %v45 = vld [vmem:[#allocation2 + $0x8] sm:$0xff]
    %v46 = vld [vmem:[#allocation5] sm:$0xff]
    %v47 = vld [vmem:[#allocation5 + $0x8] sm:$0xff]
    %v48 = vsub.f32 %v44, %v46
    %v49 = vsub.f32 %v45, %v47
    %v50 = vmul.f32 %v48, %v48
    %v51 = vmul.f32 %v49, %v49
    %v52 = vadd.f32 %v50, 0.0
    %v53 = vadd.f32 %v51, 0.0
    %v54 = vadd.f32 %v42, %v52
    %v55 = vadd.f32 %v43, %v53
    %56 = vst [vmem:[#allocation7] sm:$0xff] %v54
    %57 = vst [vmem:[#allocation7 + $0x8] sm:$0xff] %v55
    // Predicated region
    $region22: #{tpu_custom_call.1} parent=1 // pred_check
      _
    $region23: #{tpu_custom_call.1} parent=1 // pred_check_branch
      %59 = sbr.rel (0) target = $region25
    $region24: #{tpu_custom_call.1} parent=1 // pred_region
      %s61 = ssub.s32 256, 256
      %62 = vsyncadd [#allocation4], %s61
      %s64 = sshll.u32 [#allocation7], 4
      %s65 = int_to_ptr.vmem [resolvable:$true] %s64
      %67 = dma.vmem_to_hbm [thread:$0]  %s65, 256, %s2, [#allocation4]
    $region25: #{tpu_custom_call.1} parent=1 // pred_fallthru
      _
    // Predicated region
    $region26: #{tpu_custom_call.1} parent=1 // pred_check
      _
    $region27: #{tpu_custom_call.1} parent=1 // pred_check_branch
      %69 = sbr.rel (0) target = $region29
    $region28: #{tpu_custom_call.1} parent=1 // pred_region
      %70 = dma.done [#allocation4], 256
    $region29: #{tpu_custom_call.1} parent=1 // pred_fallthru
      _
    %71 = vsyncpa [#allocation3], 1
    %72 = vsyncpa [#allocation6], 1
    %73 = vsyncpa [#allocation4], 1

</llo_original>
